<compile_context>
chip_gen: v7x
topology: tpu7x:2x2x1
jax: 0.10.0
libtpu: 0.0.40
codegen_flags: <defaults>
</compile_context>

<pallas_src>
import jax
import jax.numpy as jnp
from jax.experimental import pallas as pl
from jax.experimental.pallas import tpu as pltpu

N_PERIODS = 4
TWO_PI = 2.0 * jnp.pi
LANE = 128


def st_embedding_kernel(s_ref, omega_ref, offs_ref, out_ref):
    # s_ref     : VMEM (B, 1, T_blk)   f32  time values (hours)
    # omega_ref : VMEM (1, 2P, 1)      f32  1/period (cycles/hour), repeated [w, w]
    # offs_ref  : VMEM (1, 2P, 1)      f32  phase offset: 0 (sin rows), pi/2 (cos rows)
    # out_ref   : VMEM (B, 2P, T_blk)  output, written with ONE full-tile store
    u = s_ref[...] * omega_ref[...]          # (B, 2P, T_blk) cycles — VPU broadcast mul
    frac = u - jnp.floor(u)                  # range-reduce to [0, 1) for f32 accuracy
    phase = TWO_PI * frac + offs_ref[...]    # in [0, 2*pi + pi/2)
    out_ref[...] = jnp.sin(phase).astype(out_ref.dtype)   # single unmasked store


def st_embedding(s_t, time_period, *, t_block=None, out_dtype=jnp.float32):
    B, T = s_t.shape
    P = time_period.shape[0]
    C = 2 * P

    # Host-side constant prep: 1/period (cycles per hour) + sin/cos phase offsets.
    omega = 1.0 / time_period.astype(jnp.float32)
    omega2 = jnp.concatenate([omega, omega]).reshape(1, C, 1)
    offs = jnp.concatenate(
        [jnp.zeros((P,), jnp.float32), jnp.full((P,), 0.5 * jnp.pi, jnp.float32)]
    ).reshape(1, C, 1)

    # Tile choice: as large as reasonable (mem-bound kernel, per-step overhead
    # dominates small tiles) while keeping >= 2 parallel blocks for v7x megacore.
    if t_block is None:
        if T >= 2 * LANE:
            half = max(LANE, ((T // 2) // LANE) * LANE)
            t_block = min(4096, half)
        else:
            t_block = LANE

    T_pad = pl.cdiv(T, t_block) * t_block
    s_in = s_t.astype(jnp.float32)
    if T_pad != T:
        s_in = jnp.pad(s_in, ((0, 0), (0, T_pad - T)))
    s_in = s_in[:, None, :]                                   # (B, 1, T_pad)

    grid = (T_pad // t_block,)
    out = pl.pallas_call(
        st_embedding_kernel,
        out_shape=jax.ShapeDtypeStruct((B, C, T_pad), out_dtype),
        grid=grid,
        in_specs=[
            pl.BlockSpec((B, 1, t_block), lambda i: (0, 0, i)),   # s_t tile
            pl.BlockSpec((1, C, 1), lambda i: (0, 0, 0)),         # omega (resident)
            pl.BlockSpec((1, C, 1), lambda i: (0, 0, 0)),         # offsets (resident)
        ],
        out_specs=pl.BlockSpec((B, C, t_block), lambda i: (0, 0, i)),
        compiler_params=pltpu.CompilerParams(
            dimension_semantics=("parallel",)),
    )(s_in, omega2, offs)

    return out[:, :, :T] if T_pad != T else out


def st_embedding_reference(s_t, time_period):
    # Pure-JAX reference using the same range-reduced math as the kernel.
    omega = 1.0 / time_period.astype(jnp.float32)
    u = s_t[:, None, :] * omega[None, :, None]                # (B, P, T) cycles
    frac = u - jnp.floor(u)
    phase = TWO_PI * frac
    return jnp.concatenate([jnp.sin(phase), jnp.cos(phase)], axis=1)


def st_embedding_direct(s_t, time_period):
    # "Natural" (non-range-reduced) formula; agrees to f32 large-argument accuracy.
    phase = TWO_PI * s_t[:, None, :] / time_period[None, :, None]
    return jnp.concatenate([jnp.sin(phase), jnp.cos(phase)], axis=1)


if __name__ == "__main__":
    # deterministic "parameter" from __init__: time_period in hours
    time_period = jnp.array([365.0, 30.5, 7.0, 1.0], dtype=jnp.float32) * 24.0

    key = jax.random.PRNGKey(0)
    B, T = 2, 1024
    # time stamps in hours, spread over ~a year
    s_t = jax.random.uniform(key, (B, T), dtype=jnp.float32,
                             minval=0.0, maxval=365.0 * 24.0)

    out = jax.block_until_ready(st_embedding(s_t, time_period))
    assert out.shape == (B, 2 * N_PERIODS, T)

    ref = st_embedding_reference(s_t, time_period)
    err = float(jnp.max(jnp.abs(out - ref)))
    assert jnp.allclose(out, ref, atol=1e-3, rtol=1e-3), f"max abs diff {err}"

    # Looser check against the direct 2*pi*s/period formula (f32 large-arg phase
    # rounding limits achievable agreement here).
    direct = st_embedding_direct(s_t, time_period)
    assert jnp.allclose(out, direct, atol=5e-3, rtol=0.0)

    # Ragged-T path: wrapper pads to the tile size and slices back.
    T2 = 300
    out2 = jax.block_until_ready(st_embedding(s_t[:, :T2], time_period))
    ref2 = st_embedding_reference(s_t[:, :T2], time_period)
    assert out2.shape == (B, 2 * N_PERIODS, T2)
    assert jnp.allclose(out2, ref2, atol=1e-3, rtol=1e-3)

    print("KERNEL_OK")
</pallas_src>

<mosaic_0001>
module attributes {stable_mosaic.version = 11 : i64} {
  func.func @st_embedding_kernel(%arg0: i32, %arg1: memref<2x1x512xf32, #tpu.memory_space<vmem>>, %arg2: memref<1x8x1xf32, #tpu.memory_space<vmem>>, %arg3: memref<1x8x1xf32, #tpu.memory_space<vmem>>, %arg4: memref<2x8x512xf32, #tpu.memory_space<vmem>>) attributes {dimension_semantics = [#tpu.dimension_semantics<parallel>], iteration_bounds = array<i64: 2>, scalar_prefetch = 0 : i64, scratch_operands = 0 : i64, tpu.core_type = #tpu.core_type<tc>, window_params = [{transform_indices = @transform_0, window_bounds = array<i64: 2, 1, 512>}, {pipeline_mode = #tpu.pipeline_mode<synchronous>, transform_indices = @transform_1, window_bounds = array<i64: 1, 8, 1>}, {pipeline_mode = #tpu.pipeline_mode<synchronous>, transform_indices = @transform_2, window_bounds = array<i64: 1, 8, 1>}, {transform_indices = @transform_3, window_bounds = array<i64: 2, 8, 512>}]} {
    %c0 = arith.constant 0 : index
    %c0_0 = arith.constant 0 : index
    %c0_1 = arith.constant 0 : index
    %0 = vector.load %arg1[%c0, %c0_0, %c0_1] : memref<2x1x512xf32, #tpu.memory_space<vmem>>, vector<2x1x512xf32>
    %c0_2 = arith.constant 0 : index
    %c0_3 = arith.constant 0 : index
    %c0_4 = arith.constant 0 : index
    %1 = vector.load %arg2[%c0_2, %c0_3, %c0_4] : memref<1x8x1xf32, #tpu.memory_space<vmem>>, vector<1x8x1xf32>
    %2 = vector.broadcast %0 : vector<2x1x512xf32> to vector<2x8x512xf32>
    %3 = vector.broadcast %1 : vector<1x8x1xf32> to vector<2x8x512xf32>
    %4 = arith.mulf %2, %3 : vector<2x8x512xf32>
    %5 = math.floor %4 : vector<2x8x512xf32>
    %6 = arith.subf %4, %5 : vector<2x8x512xf32>
    %cst = arith.constant 6.28318548 : f32
    %7 = vector.broadcast %cst : f32 to vector<2x8x512xf32>
    %8 = arith.mulf %7, %6 : vector<2x8x512xf32>
    %c0_5 = arith.constant 0 : index
    %c0_6 = arith.constant 0 : index
    %c0_7 = arith.constant 0 : index
    %9 = vector.load %arg3[%c0_5, %c0_6, %c0_7] : memref<1x8x1xf32, #tpu.memory_space<vmem>>, vector<1x8x1xf32>
    %10 = vector.broadcast %9 : vector<1x8x1xf32> to vector<2x8x512xf32>
    %11 = arith.addf %8, %10 : vector<2x8x512xf32>
    %12 = math.sin %11 : vector<2x8x512xf32>
    %c0_8 = arith.constant 0 : index
    %c0_9 = arith.constant 0 : index
    %c0_10 = arith.constant 0 : index
    %13 = vector.load %arg4[%c0_8, %c0_9, %c0_10] : memref<2x8x512xf32, #tpu.memory_space<vmem>>, vector<2x8x512xf32>
    tpu.vector_store %arg4[%c0_8, %c0_9, %c0_10], %12 {strides = array<i32>} : memref<2x8x512xf32, #tpu.memory_space<vmem>>, vector<2x8x512xf32>,
    return
  }
  func.func @transform_0(%arg0: i32) -> (i32, i32, i32) {
    %c0_i32 = arith.constant 0 : i32
    %c0_i32_0 = arith.constant 0 : i32
    %c0_i32_1 = arith.constant 0 : i32
    return %c0_i32, %c0_i32_0, %arg0 : i32, i32, i32
  }
  func.func @transform_1(%arg0: i32) -> (i32, i32, i32) {
    %c0_i32 = arith.constant 0 : i32
    %c0_i32_0 = arith.constant 0 : i32
    %c0_i32_1 = arith.constant 0 : i32
    %c0_i32_2 = arith.constant 0 : i32
    return %c0_i32, %c0_i32_0, %c0_i32_1 : i32, i32, i32
  }
  func.func @transform_2(%arg0: i32) -> (i32, i32, i32) {
    %c0_i32 = arith.constant 0 : i32
    %c0_i32_0 = arith.constant 0 : i32
    %c0_i32_1 = arith.constant 0 : i32
    %c0_i32_2 = arith.constant 0 : i32
    return %c0_i32, %c0_i32_0, %c0_i32_1 : i32, i32, i32
  }
  func.func @transform_3(%arg0: i32) -> (i32, i32, i32) {
    %c0_i32 = arith.constant 0 : i32
    %c0_i32_0 = arith.constant 0 : i32
    %c0_i32_1 = arith.constant 0 : i32
    return %c0_i32, %c0_i32_0, %arg0 : i32, i32, i32
  }
}

</mosaic_0001>

<llo_original>
// kernel: tpu_custom_call.1
$region0: #{tpu_custom_call.1}
  #allocation0 [shape = 'u32[]', space=smem, size = 0x4, offset = 0x4, fixed_abs, tag = 'smem constant byte address 0x4 - core index']
  #allocation1 [shape = 'u32[144,128]{1,0:T(1,128)}', space=vmem, size = 0x12000, scoped, tag = 'internal scratch']
  %s0 = inlined_call_operand.vmem [shape: f32[2,1,1024], index: 0, kind: input, shape index: {}]
  %s1 = inlined_call_operand.vmem [shape: f32[1,8,1], index: 1, kind: input, shape index: {}]
  %s2 = inlined_call_operand.vmem [shape: f32[1,8,1], index: 2, kind: input, shape index: {}]
  %s3 = inlined_call_operand.hbm [shape: f32[2,8,1024], index: 3, kind: output, shape index: {}]
  %s4 = sld [smem:[#allocation0]]
  $region86: #{tpu_custom_call.1} parent=0
    _
  %s6 = ssub.s32 1, %s4
  %s7 = scalar_select 0, %s6, %s4
  $region1: #{tpu_custom_call.1} parent=0
    #allocation2 [shape = 'u8[8192]{0}', space=vmem, size = 0x2000, scoped, tag = 'input window, operand 0']
    #allocation3 [shape = 'u8[65536]{0}', space=vmem, size = 0x10000, scoped, tag = 'output window, operand 0']
    #allocation4 [shape = 's32[2]{0}', space=sflag, size = 0x8, scoped, tag = 'scoped memory for tpu_custom_call.1']
    %8 = vsyncpa [#allocation4], 0
    %s9 = scalar_lea.sflag [#allocation4], 1
    %10 = vsyncpa %s9, 0
    loop: start=0, step=1, limit=4
    $region2: #{tpu_custom_call.1} parent=1 // loop_pre_header
      _
    $region3: #{tpu_custom_call.1} parent=1 // loop_header
      %s12 = sphi 0, %s16
      %p13 = scmp.ge.s32.totalorder %s12, 4
      %s22 = sphi 0, %s24
      %s25 = sphi 0, %s22
      %s26 = sphi 0, %s25
      %s42 = sphi 0, %s26
      %s46 = sphi 0, %s46
      %s48 = sphi 0, %s46
      %s49 = sphi 0, %s48
      %s63 = sphi 0, %s49
      %s67 = sphi 0, %s67
      %s69 = sphi 0, %s67
      %s70 = sphi 0, %s69
      %s84 = sphi 0, %s70
      %s90 = sphi 0, %s92
      %s93 = sphi 0, %s90
      %s94 = sphi 0, %s93
      %s110 = sphi 0, %s94
    $region4: #{tpu_custom_call.1} parent=1 // loop_header_branch
      %15 = sbr.rel (%p13) target = $region8
    $region5: #{tpu_custom_call.1} parent=1 // loop_body
      %s17 = ssub.s32 %s12, 1
      %s18 = ssub.s32 %s12, 2
      %s19 = sadd.s32 %s12, 1
      %s20 = ssub.s32 %s12, %s19
      %p21 = scmp.eq.s32.totalorder %s20, 0
      %s23 = sadd.s32 %s22, 1
      %s24 = scalar_select %p21, %s22, %s23
      %p27 = pneg %p21
      %p28 = scmp.eq.s32.totalorder %s12, 1
      %p29 = por %p27, %p28
      %p30 = scmp.ne.s32.totalorder %s22, %s25
      %p31 = scmp.eq.s32.totalorder %s12, 0
      %p32 = por %p30, %p31
      %p33 = scmp.ne.s32.totalorder %s22, %s25
      %p34 = scmp.eq.s32.totalorder %s17, 1
      %p35 = por %p33, %p34
      %p36 = scmp.ne.s32.totalorder %s25, %s26
      %p37 = scmp.eq.s32.totalorder %s17, 0
      %p38 = por %p36, %p37
      %p39 = scmp.ne.s32.totalorder %s25, %s26
      %p40 = scmp.eq.s32.totalorder %s18, 1
      %p41 = por %p39, %p40
      %p43 = scmp.ne.s32.totalorder %s26, %s42
      %p44 = scmp.eq.s32.totalorder %s18, 0
      %p45 = por %p43, %p44
      %s47 = sadd.s32 %s46, 1
      %p50 = scmp.eq.s32.totalorder %s12, 1
      %p51 = scmp.ne.s32.totalorder %s46, %s48
      %p52 = scmp.eq.s32.totalorder %s12, 0
      %p53 = por %p51, %p52
      %p54 = scmp.ne.s32.totalorder %s46, %s48
      %p55 = scmp.eq.s32.totalorder %s17, 1
      %p56 = por %p54, %p55
      %p57 = scmp.ne.s32.totalorder %s48, %s49
      %p58 = scmp.eq.s32.totalorder %s17, 0
      %p59 = por %p57, %p58
      %p60 = scmp.ne.s32.totalorder %s48, %s49
      %p61 = scmp.eq.s32.totalorder %s18, 1
      %p62 = por %p60, %p61
      %p64 = scmp.ne.s32.totalorder %s49, %s63
      %p65 = scmp.eq.s32.totalorder %s18, 0
      %p66 = por %p64, %p65
      %s68 = sadd.s32 %s67, 1
      %p71 = scmp.eq.s32.totalorder %s12, 1
      %p72 = scmp.ne.s32.totalorder %s67, %s69
      %p73 = scmp.eq.s32.totalorder %s12, 0
      %p74 = por %p72, %p73
      %p75 = scmp.ne.s32.totalorder %s67, %s69
      %p76 = scmp.eq.s32.totalorder %s17, 1
      %p77 = por %p75, %p76
      %p78 = scmp.ne.s32.totalorder %s69, %s70
      %p79 = scmp.eq.s32.totalorder %s17, 0
      %p80 = por %p78, %p79
      %p81 = scmp.ne.s32.totalorder %s69, %s70
      %p82 = scmp.eq.s32.totalorder %s18, 1
      %p83 = por %p81, %p82
      %p85 = scmp.ne.s32.totalorder %s70, %s84
      %p86 = scmp.eq.s32.totalorder %s18, 0
      %p87 = por %p85, %p86
      %s88 = ssub.s32 %s12, %s19
      %p89 = scmp.eq.s32.totalorder %s88, 0
      %s91 = sadd.s32 %s90, 1
      %s92 = scalar_select %p89, %s90, %s91
      %p95 = pneg %p89
      %p96 = scmp.eq.s32.totalorder %s12, 1
      %p97 = por %p95, %p96
      %p98 = scmp.ne.s32.totalorder %s90, %s93
      %p99 = scmp.eq.s32.totalorder %s12, 0
      %p100 = por %p98, %p99
      %p101 = scmp.ne.s32.totalorder %s90, %s93
      %p102 = scmp.eq.s32.totalorder %s17, 1
      %p103 = por %p101, %p102
      %p104 = scmp.ne.s32.totalorder %s93, %s94
      %p105 = scmp.eq.s32.totalorder %s17, 0
      %p106 = por %p104, %p105
      %p107 = scmp.ne.s32.totalorder %s93, %s94
      %p108 = scmp.eq.s32.totalorder %s18, 1
      %p109 = por %p107, %p108
      %p111 = scmp.ne.s32.totalorder %s94, %s110
      %p112 = scmp.eq.s32.totalorder %s18, 0
      %p113 = por %p111, %p112
      %p114 = scmp.le.s32.totalorder 1, %s12
      %p115 = scmp.lt.s32.totalorder %s12, 3
      %p116 = pnand %p114, %p115
      %p117 = pneg %p116
      // Predicated region
      $region9: #{tpu_custom_call.1} parent=5 // pred_check
        _
      $region10: #{tpu_custom_call.1} parent=5 // pred_check_branch
        %119 = sbr.rel (%p116) target = $region12
      $region11: #{tpu_custom_call.1} parent=5 // pred_region
        %s120 = ssub.s32 %s12, 1
        // Predicated region
        $region13: #{tpu_custom_call.1} parent=11 // pred_check
          %p121 = pneg %p59
        $region14: #{tpu_custom_call.1} parent=11 // pred_check_branch
          %123 = sbr.rel (%p121) target = $region16
        $region15: #{tpu_custom_call.1} parent=11 // pred_region
          _
        $region16: #{tpu_custom_call.1} parent=11 // pred_fallthru
          _
        // Predicated region
        $region17: #{tpu_custom_call.1} parent=11 // pred_check
          %p124 = pneg %p80
        $region18: #{tpu_custom_call.1} parent=11 // pred_check_branch
          %126 = sbr.rel (%p124) target = $region20
        $region19: #{tpu_custom_call.1} parent=11 // pred_region
          _
        $region20: #{tpu_custom_call.1} parent=11 // pred_fallthru
          _
      $region12: #{tpu_custom_call.1} parent=5 // pred_fallthru
        _
      %p127 = scmp.lt.s32.totalorder %s12, 2
      // Predicated region
      $region21: #{tpu_custom_call.1} parent=5 // pred_check
        %p128 = pneg %p127
      $region22: #{tpu_custom_call.1} parent=5 // pred_check_branch
        %130 = sbr.rel (%p128) target = $region24
      $region23: #{tpu_custom_call.1} parent=5 // pred_region
        // Predicated region
        $region25: #{tpu_custom_call.1} parent=23 // pred_check
          %p131 = pneg %p32
        $region26: #{tpu_custom_call.1} parent=23 // pred_check_branch
          %133 = sbr.rel (%p131) target = $region28
        $region27: #{tpu_custom_call.1} parent=23 // pred_region
          %s134 = sand.u32 %s22, 1
          %s135 = sand.u32 %s22, 1
          %s136 = smul.addr %s135, 8
          %s137 = scalar_lea.vmem [#allocation2], %s136
          %s138 = smul.u32 4, %s12
          %s139 = scalar_lea.vmem %s0, %s138
          // Predicated region
          $region29: #{tpu_custom_call.1} parent=27 // pred_check
            _
          $region30: #{tpu_custom_call.1} parent=27 // pred_check_branch
            %141 = sbr.rel (0) target = $region32
          $region31: #{tpu_custom_call.1} parent=27 // pred_region
            // Predicated region
            $region33: #{tpu_custom_call.1} parent=31 // pred_check
              _
            $region34: #{tpu_custom_call.1} parent=31 // pred_check_branch
              %143 = sbr.rel target = $region36
            $region35: #{tpu_custom_call.1} parent=31 // pred_region
              // Predicated region
              $region48: #{tpu_custom_call.1} parent=35 // pred_check
                _
              $region49: #{tpu_custom_call.1} parent=35 // pred_check_branch
                %160 = sbr.rel (0) target = $region51
              $region50: #{tpu_custom_call.1} parent=35 // pred_region
                loop: start=0, step=1, limit=1
                $region52: #{tpu_custom_call.1} parent=50 // loop_pre_header
                  _
                $region53: #{tpu_custom_call.1} parent=50 // loop_header
                  %s162 = sphi 0, %s166
                  %p163 = scmp.ge.s32.totalorder %s162, 1
                  %s167 = sphi %s139, %s139
                  %s168 = sphi %s137, %s137
                $region54: #{tpu_custom_call.1} parent=50 // loop_header_branch
                  %165 = sbr.rel (%p163) target = $region58
                $region55: #{tpu_custom_call.1} parent=50 // loop_body
                  _
                $region56: #{tpu_custom_call.1} parent=50 // loop_footer
                  %s166 = sadd.s32 1, %s162
                $region57: #{tpu_custom_call.1} parent=50 // loop_footer_branch
                  %161 = sbr.rel target = $region53
                $region58: #{tpu_custom_call.1} parent=50 // loop_exit
                  _
                loop: start=0, step=1, limit=1
                $region59: #{tpu_custom_call.1} parent=50 // loop_pre_header
                  _
                $region60: #{tpu_custom_call.1} parent=50 // loop_header
                  %s171 = sphi 0, %s175
                  %p172 = scmp.ge.s32.totalorder %s171, 1
                  %s176 = sphi %s139, %s139
                  %s177 = sphi %s137, %s137
                $region61: #{tpu_custom_call.1} parent=50 // loop_header_branch
                  %174 = sbr.rel (%p172) target = $region65
                $region62: #{tpu_custom_call.1} parent=50 // loop_body
                  %v178 = vld [vmem:[%s176] sm:$0xf]
                  %179 = vst [vmem:[%s177] sm:$0xf] %v178
                  %v180 = vld [vmem:[%s176 + $0x8] sm:$0xf]
                  %181 = vst [vmem:[%s177 + $0x4] sm:$0xf] %v180
                $region63: #{tpu_custom_call.1} parent=50 // loop_footer
                  %s175 = sadd.s32 1, %s171
                $region64: #{tpu_custom_call.1} parent=50 // loop_footer_branch
                  %170 = sbr.rel target = $region60
                $region65: #{tpu_custom_call.1} parent=50 // loop_exit
                  _
              $region51: #{tpu_custom_call.1} parent=35 // pred_fallthru
                _
            $region36: #{tpu_custom_call.1} parent=31 // pred_fallthru
              _
            // Predicated region
            $region37: #{tpu_custom_call.1} parent=31 // pred_check
              _
            $region38: #{tpu_custom_call.1} parent=31 // pred_check_branch
              %145 = sbr.rel (0) target = $region40
            $region39: #{tpu_custom_call.1} parent=31 // pred_region
              loop: start=0, step=1, limit=1
              $region41: #{tpu_custom_call.1} parent=39 // loop_pre_header
                _
              $region42: #{tpu_custom_call.1} parent=39 // loop_header
                %s148 = sphi 0, %s152
                %p149 = scmp.ge.s32.totalorder %s148, 1
                %s153 = sphi %s139, %s139
                %s154 = sphi %s137, %s137
              $region43: #{tpu_custom_call.1} parent=39 // loop_header_branch
                %151 = sbr.rel (%p149) target = $region47
              $region44: #{tpu_custom_call.1} parent=39 // loop_body
                %v155 = vld [vmem:[%s153] sm:$0xf]
                %156 = vst [vmem:[%s154] sm:$0xf] %v155
                %v157 = vld [vmem:[%s153 + $0x8] sm:$0xf]
                %158 = vst [vmem:[%s154 + $0x4] sm:$0xf] %v157
              $region45: #{tpu_custom_call.1} parent=39 // loop_footer
                %s152 = sadd.s32 1, %s148
              $region46: #{tpu_custom_call.1} parent=39 // loop_footer_branch
                %147 = sbr.rel target = $region42
              $region47: #{tpu_custom_call.1} parent=39 // loop_exit
                _
            $region40: #{tpu_custom_call.1} parent=31 // pred_fallthru
              _
          $region32: #{tpu_custom_call.1} parent=27 // pred_fallthru
            _
          %182 = vnop
        $region28: #{tpu_custom_call.1} parent=23 // pred_fallthru
          _
      $region24: #{tpu_custom_call.1} parent=5 // pred_fallthru
        _
      %p183 = scmp.le.s32.totalorder 1, %s12
      %p184 = scmp.lt.s32.totalorder %s12, 3
      %p185 = pnand %p183, %p184
      %p186 = pneg %p185
      // Predicated region
      $region66: #{tpu_custom_call.1} parent=5 // pred_check
        _
      $region67: #{tpu_custom_call.1} parent=5 // pred_check_branch
        %188 = sbr.rel (%p185) target = $region69
      $region68: #{tpu_custom_call.1} parent=5 // pred_region
        %s189 = ssub.s32 %s12, 1
        %s190 = sand.u32 %s25, 1
        %s191 = sand.u32 %s25, 1
        %s192 = smul.addr %s191, 8
        %s193 = scalar_lea.vmem [#allocation2], %s192
        // Predicated region
        $region70: #{tpu_custom_call.1} parent=68 // pred_check
          %p194 = pneg %p38
        $region71: #{tpu_custom_call.1} parent=68 // pred_check_branch
          %196 = sbr.rel (%p194) target = $region73
        $region72: #{tpu_custom_call.1} parent=68 // pred_region
          _
        $region73: #{tpu_custom_call.1} parent=68 // pred_fallthru
          _
        %s197 = sand.u32 %s25, 1
        %s198 = sand.u32 %s25, 1
        %s199 = smul.addr %s198, 8
        %s200 = scalar_lea.vmem [#allocation2], %s199
        %p201 = pneg %p38
        %p202 = pneg %p35
        %p203 = pneg %p59
        %p204 = pneg %p56
        %p205 = pneg %p80
        %p206 = pneg %p77
        %p207 = pneg %p106
        %p208 = pneg %p103
        %s209 = sand.u32 %s93, 1
        %s210 = scalar_lea.sflag [#allocation4], %s209
        %s211 = sand.u32 %s93, 1
        %s212 = smul.addr %s211, 64
        %s213 = scalar_lea.vmem [#allocation3], %s212
        %s214 = smul.u32 4, %s17
        %s215 = smul.u32 4, %s17
        %v216 = vld [vmem:[%s193] sm:$0xf]
        %v217 = vld [vmem:[%s193 + $0x4] sm:$0xf]
        %v218 = vld [vmem:[%s1] sm:$0xff]
        %v221 = vlaneseq
        %v222 = vshrl.u32 %v221, 7
        %v223 = vsub.s32 0, %v222
        %v224 = vrot.slane %v216, %v223
        %v225 = vlaneseq
        %v226 = vshrl.u32 %v225, 7
        %v227 = vsub.s32 1, %v226
        %v228 = vrot.slane %v216, %v227
        %v229 = vlaneseq
        %v230 = vshrl.u32 %v229, 7
        %v231 = vsub.s32 2, %v230
        %v232 = vrot.slane %v216, %v231
        %v233 = vlaneseq
        %v234 = vshrl.u32 %v233, 7
        %v235 = vsub.s32 3, %v234
        %v236 = vrot.slane %v216, %v235
        %v237 = vlaneseq
        %v238 = vshrl.u32 %v237, 7
        %v239 = vsub.s32 0, %v238
        %v240 = vrot.slane %v217, %v239
        %v241 = vlaneseq
        %v242 = vshrl.u32 %v241, 7
        %v243 = vsub.s32 1, %v242
        %v244 = vrot.slane %v217, %v243
        %v245 = vlaneseq
        %v246 = vshrl.u32 %v245, 7
        %v247 = vsub.s32 2, %v246
        %v248 = vrot.slane %v217, %v247
        %v249 = vlaneseq
        %v250 = vshrl.u32 %v249, 7
        %v251 = vsub.s32 3, %v250
        %v252 = vrot.slane %v217, %v251
        %262 = vset.pattern.permute.xlu0 0
        %263 = vperm.xlu0 %262, %v218
        %v264 = vpop.permute.xlu0 %263
        %v266 = vmul.f32 %v224, %v264
        %v267 = vmul.f32 %v228, %v264
        %v268 = vmul.f32 %v232, %v264
        %v269 = vmul.f32 %v236, %v264
        %v270 = vmul.f32 %v240, %v264
        %v271 = vmul.f32 %v244, %v264
        %v272 = vmul.f32 %v248, %v264
        %v273 = vmul.f32 %v252, %v264
        %v274 = vfloor.f32 %v266
        %v275 = vfloor.f32 %v267
        %v276 = vfloor.f32 %v268
        %v277 = vfloor.f32 %v269
        %v278 = vfloor.f32 %v270
        %v279 = vfloor.f32 %v271
        %v280 = vfloor.f32 %v272
        %v281 = vfloor.f32 %v273
        %v282 = vsub.f32 %v266, %v274
        %v283 = vsub.f32 %v267, %v275
        %v284 = vsub.f32 %v268, %v276
        %v285 = vsub.f32 %v269, %v277
        %v286 = vsub.f32 %v270, %v278
        %v287 = vsub.f32 %v271, %v279
        %v288 = vsub.f32 %v272, %v280
        %v289 = vsub.f32 %v273, %v281
        %v290 = vmul.f32 %v282, 6.2831855
        %v291 = vmul.f32 %v283, 6.2831855
        %v292 = vmul.f32 %v284, 6.2831855
        %v293 = vmul.f32 %v285, 6.2831855
        %v294 = vmul.f32 %v286, 6.2831855
        %v295 = vmul.f32 %v287, 6.2831855
        %v296 = vmul.f32 %v288, 6.2831855
        %v297 = vmul.f32 %v289, 6.2831855
        %v298 = vld [vmem:[%s2] sm:$0xff]
        %300 = vset.pattern.permute.xlu0 0
        %301 = vperm.xlu0 %300, %v298
        %v302 = vpop.permute.xlu0 %301
        %v304 = vadd.f32 %v290, %v302
        %v305 = vadd.f32 %v291, %v302
        %v306 = vadd.f32 %v292, %v302
        %v307 = vadd.f32 %v293, %v302
        %v308 = vadd.f32 %v294, %v302
        %v309 = vadd.f32 %v295, %v302
        %v310 = vadd.f32 %v296, %v302
        %v311 = vadd.f32 %v297, %v302
        %v312 = vand.u32 2147483647, %v304
        %vm313 = vcmp.le.f32.partialorder %v312, 0.7853982
        %vm314 = vcmp.lt.s32.totalorder %v304, 0
        %v315 = vand.u32 %v304, 2139095040
        %v316 = vshrl.u32 %v315, 23
        %v317 = vsub.s32 %v316, 127
        %v318 = vand.u32 2147483647, %v304
        %v319 = vand.u32 %v318, 8388607
        %v320 = vor.u32 %v319, 8388608
        %v321 = vsub.s32 0, %v320
        %v322 = vadd.s32 %v317, 1
        %vm323 = vcmp.gt.s32.totalorder %v322, 0
        %v324 = vsel %vm323, %v322, 0
        %v325 = vshrl.u32 %v324, 5
        %v326 = vand.u32 %v324, 31
        %v327 = vsub.s32 32, %v326
        %v328 = vshrl.u32 683565275, %v327
        %v329 = vshll.u32 683565275, %v326
        %v330 = vshrl.u32 2475754826, %v327
        %v331 = vor.u32 %v329, %v330
        %v332 = vshll.u32 2475754826, %v326
        %v333 = vshrl.u32 2131351028, %v327
        %v334 = vor.u32 %v332, %v333
        %v335 = vshll.u32 2131351028, %v326
        %v336 = vshrl.u32 2102212464, %v327
        %v337 = vor.u32 %v335, %v336
        %v338 = vshll.u32 2102212464, %v326
        %v339 = vshrl.u32 920167782, %v327
        %v340 = vor.u32 %v338, %v339
        %v341 = vshll.u32 920167782, %v326
        %v342 = vshrl.u32 1326507024, %v327
        %v343 = vor.u32 %v341, %v342
        %vm344 = vcmp.lt.s32.totalorder %v325, 1
        %vm345 = vcmp.lt.s32.totalorder %v325, 2
        %vm346 = vcmp.lt.s32.totalorder %v325, 3
        %vm347 = vcmp.lt.s32.totalorder %v325, 4
        %v348 = vsel %vm344, %v328, %v331
        %v349 = vsel %vm347, %v337, 2102212464
        %v350 = vsel %vm346, %v334, %v349
        %v351 = vsel %vm345, %v348, %v350
        %v352 = vsel %vm344, %v331, %v334
        %v353 = vsel %vm347, %v340, 920167782
        %v354 = vsel %vm346, %v337, %v353
        %v355 = vsel %vm345, %v352, %v354
        %v356 = vsel %vm344, %v334, %v337
        %v357 = vsel %vm347, %v343, 1326507024
        %v358 = vsel %vm346, %v340, %v357
        %v359 = vsel %vm345, %v356, %v358
        %v360 = vshll.u32 %v320, 8
        %v361 = vmul.u32.u64.compose %v360, %v359
        %v362 = vextract.low.u32 %v361
        %v363 = vextract.high.u32 %v361
        %v364 = vmul.u32.u64.compose %v360, %v355
        %v365 = vextract.low.u32 %v364
        %v366 = vextract.high.u32 %v364
        %v367 = vmul.u32 %v360, %v351
        %v368 = vadd.s32 %v363, %v365
        %vm369 = vc.u32 %v363, %v365
        %v370 = vadd.s32 %v366, 1
        %v371 = vsel %vm369, %v370, %v366
        %v372 = vadd.s32 %v367, %v371
        %v373 = vadd.s32 %v372, 536870912
        %v374 = vshrl.u32 %v373, 30
        %v375 = vshll.u32 %v374, 30
        %v376 = vsub.s32 %v372, %v375
        %vm377 = vcmp.lt.s32.totalorder %v376, 0
        %v378 = vsub.s32 0, %v376
        %v379 = vsel %vm377, %v378, %v376
        %v380 = vclz %v379
        %v381 = vsub.s32 %v380, 2
        %vm382 = vcmp.gt.s32.totalorder 0, %v381
        %v383 = vsel %vm382, 0, %v381
        %v384 = vsub.s32 32, %v383
        %v385 = vshll.u32 %v376, %v383
        %v386 = vshrl.u32 %v368, %v384
        %v387 = vor.u32 %v385, %v386
        %v388 = vsub.s32 4294967266, %v383
        %v389 = vadd.s32 %v388, 127
        %v390 = vshll.u32 %v389, 23
        %v391 = vor.u32 4788187, %v390
        %v392 = vand.u32 2147483647, %v391
        %v394 = vcvt.s32.f32 %v387
        %v395 = vmul.f32 %v394, %v392
        %v396 = vxor.u32 %v395, 2147483648
        %v397 = vsel %vm314, %v396, %v395
        %v398 = vsub.s32 4, %v374
        %v399 = vsel %vm314, %v398, %v374
        %v400 = vsel %vm313, %v304, %v397
        %v401 = vsel %vm313, 0, %v399
        %v402 = vcosq.f32.pop %v400
        %v403 = vsinq.f32.pop %v400
        %vm404 = vweird.f32 %v304
        %v405 = vadd.s32 %v401, 3
        %v406 = vand.u32 %v405, 3
        %vm407 = vcmp.lt.s32.totalorder %v406, 2
        %vm408 = vcmp.eq.s32.totalorder %v406, 0
        %v409 = vxor.u32 %v403, 2147483648
        %v410 = vsel %vm408, %v402, %v409
        %vm411 = vcmp.eq.s32.totalorder %v406, 2
        %v412 = vxor.u32 %v402, 2147483648
        %v413 = vsel %vm411, %v412, %v403
        %v414 = vsel %vm407, %v410, %v413
        %v415 = vsel %vm404, nan, %v414
        %v416 = vand.u32 2147483647, %v305
        %vm417 = vcmp.le.f32.partialorder %v416, 0.7853982
        %vm418 = vcmp.lt.s32.totalorder %v305, 0
        %v419 = vand.u32 %v305, 2139095040
        %v420 = vshrl.u32 %v419, 23
        %v421 = vsub.s32 %v420, 127
        %v422 = vand.u32 2147483647, %v305
        %v423 = vand.u32 %v422, 8388607
        %v424 = vor.u32 %v423, 8388608
        %v425 = vsub.s32 0, %v424
        %v426 = vadd.s32 %v421, 1
        %vm427 = vcmp.gt.s32.totalorder %v426, 0
        %v428 = vsel %vm427, %v426, 0
        %v429 = vshrl.u32 %v428, 5
        %v430 = vand.u32 %v428, 31
        %v431 = vsub.s32 32, %v430
        %v432 = vshrl.u32 683565275, %v431
        %v433 = vshll.u32 683565275, %v430
        %v434 = vshrl.u32 2475754826, %v431
        %v435 = vor.u32 %v433, %v434
        %v436 = vshll.u32 2475754826, %v430
        %v437 = vshrl.u32 2131351028, %v431
        %v438 = vor.u32 %v436, %v437
        %v439 = vshll.u32 2131351028, %v430
        %v440 = vshrl.u32 2102212464, %v431
        %v441 = vor.u32 %v439, %v440
        %v442 = vshll.u32 2102212464, %v430
        %v443 = vshrl.u32 920167782, %v431
        %v444 = vor.u32 %v442, %v443
        %v445 = vshll.u32 920167782, %v430
        %v446 = vshrl.u32 1326507024, %v431
        %v447 = vor.u32 %v445, %v446
        %vm448 = vcmp.lt.s32.totalorder %v429, 1
        %vm449 = vcmp.lt.s32.totalorder %v429, 2
        %vm450 = vcmp.lt.s32.totalorder %v429, 3
        %vm451 = vcmp.lt.s32.totalorder %v429, 4
        %v452 = vsel %vm448, %v432, %v435
        %v453 = vsel %vm451, %v441, 2102212464
        %v454 = vsel %vm450, %v438, %v453
        %v455 = vsel %vm449, %v452, %v454
        %v456 = vsel %vm448, %v435, %v438
        %v457 = vsel %vm451, %v444, 920167782
        %v458 = vsel %vm450, %v441, %v457
        %v459 = vsel %vm449, %v456, %v458
        %v460 = vsel %vm448, %v438, %v441
        %v461 = vsel %vm451, %v447, 1326507024
        %v462 = vsel %vm450, %v444, %v461
        %v463 = vsel %vm449, %v460, %v462
        %v464 = vshll.u32 %v424, 8
        %v465 = vmul.u32.u64.compose %v464, %v463
        %v466 = vextract.low.u32 %v465
        %v467 = vextract.high.u32 %v465
        %v468 = vmul.u32.u64.compose %v464, %v459
        %v469 = vextract.low.u32 %v468
        %v470 = vextract.high.u32 %v468
        %v471 = vmul.u32 %v464, %v455
        %v472 = vadd.s32 %v467, %v469
        %vm473 = vc.u32 %v467, %v469
        %v474 = vadd.s32 %v470, 1
        %v475 = vsel %vm473, %v474, %v470
        %v476 = vadd.s32 %v471, %v475
        %v477 = vadd.s32 %v476, 536870912
        %v478 = vshrl.u32 %v477, 30
        %v479 = vshll.u32 %v478, 30
        %v480 = vsub.s32 %v476, %v479
        %vm481 = vcmp.lt.s32.totalorder %v480, 0
        %v482 = vsub.s32 0, %v480
        %v483 = vsel %vm481, %v482, %v480
        %v484 = vclz %v483
        %v485 = vsub.s32 %v484, 2
        %vm486 = vcmp.gt.s32.totalorder 0, %v485
        %v487 = vsel %vm486, 0, %v485
        %v488 = vsub.s32 32, %v487
        %v489 = vshll.u32 %v480, %v487
        %v490 = vshrl.u32 %v472, %v488
        %v491 = vor.u32 %v489, %v490
        %v492 = vsub.s32 4294967266, %v487
        %v493 = vadd.s32 %v492, 127
        %v494 = vshll.u32 %v493, 23
        %v495 = vor.u32 4788187, %v494
        %v496 = vand.u32 2147483647, %v495
        %v498 = vcvt.s32.f32 %v491
        %v499 = vmul.f32 %v498, %v496
        %v500 = vxor.u32 %v499, 2147483648
        %v501 = vsel %vm418, %v500, %v499
        %v502 = vsub.s32 4, %v478
        %v503 = vsel %vm418, %v502, %v478
        %v504 = vsel %vm417, %v305, %v501
        %v505 = vsel %vm417, 0, %v503
        %v506 = vcosq.f32.pop %v504
        %v507 = vsinq.f32.pop %v504
        %vm508 = vweird.f32 %v305
        %v509 = vadd.s32 %v505, 3
        %v510 = vand.u32 %v509, 3
        %vm511 = vcmp.lt.s32.totalorder %v510, 2
        %vm512 = vcmp.eq.s32.totalorder %v510, 0
        %v513 = vxor.u32 %v507, 2147483648
        %v514 = vsel %vm512, %v506, %v513
        %vm515 = vcmp.eq.s32.totalorder %v510, 2
        %v516 = vxor.u32 %v506, 2147483648
        %v517 = vsel %vm515, %v516, %v507
        %v518 = vsel %vm511, %v514, %v517
        %v519 = vsel %vm508, nan, %v518
        %v520 = vand.u32 2147483647, %v306
        %vm521 = vcmp.le.f32.partialorder %v520, 0.7853982
        %vm522 = vcmp.lt.s32.totalorder %v306, 0
        %v523 = vand.u32 %v306, 2139095040
        %v524 = vshrl.u32 %v523, 23
        %v525 = vsub.s32 %v524, 127
        %v526 = vand.u32 2147483647, %v306
        %v527 = vand.u32 %v526, 8388607
        %v528 = vor.u32 %v527, 8388608
        %v529 = vsub.s32 0, %v528
        %v530 = vadd.s32 %v525, 1
        %vm531 = vcmp.gt.s32.totalorder %v530, 0
        %v532 = vsel %vm531, %v530, 0
        %v533 = vshrl.u32 %v532, 5
        %v534 = vand.u32 %v532, 31
        %v535 = vsub.s32 32, %v534
        %v536 = vshrl.u32 683565275, %v535
        %v537 = vshll.u32 683565275, %v534
        %v538 = vshrl.u32 2475754826, %v535
        %v539 = vor.u32 %v537, %v538
        %v540 = vshll.u32 2475754826, %v534
        %v541 = vshrl.u32 2131351028, %v535
        %v542 = vor.u32 %v540, %v541
        %v543 = vshll.u32 2131351028, %v534
        %v544 = vshrl.u32 2102212464, %v535
        %v545 = vor.u32 %v543, %v544
        %v546 = vshll.u32 2102212464, %v534
        %v547 = vshrl.u32 920167782, %v535
        %v548 = vor.u32 %v546, %v547
        %v549 = vshll.u32 920167782, %v534
        %v550 = vshrl.u32 1326507024, %v535
        %v551 = vor.u32 %v549, %v550
        %vm552 = vcmp.lt.s32.totalorder %v533, 1
        %vm553 = vcmp.lt.s32.totalorder %v533, 2
        %vm554 = vcmp.lt.s32.totalorder %v533, 3
        %vm555 = vcmp.lt.s32.totalorder %v533, 4
        %v556 = vsel %vm552, %v536, %v539
        %v557 = vsel %vm555, %v545, 2102212464
        %v558 = vsel %vm554, %v542, %v557
        %v559 = vsel %vm553, %v556, %v558
        %v560 = vsel %vm552, %v539, %v542
        %v561 = vsel %vm555, %v548, 920167782
        %v562 = vsel %vm554, %v545, %v561
        %v563 = vsel %vm553, %v560, %v562
        %v564 = vsel %vm552, %v542, %v545
        %v565 = vsel %vm555, %v551, 1326507024
        %v566 = vsel %vm554, %v548, %v565
        %v567 = vsel %vm553, %v564, %v566
        %v568 = vshll.u32 %v528, 8
        %v569 = vmul.u32.u64.compose %v568, %v567
        %v570 = vextract.low.u32 %v569
        %v571 = vextract.high.u32 %v569
        %v572 = vmul.u32.u64.compose %v568, %v563
        %v573 = vextract.low.u32 %v572
        %v574 = vextract.high.u32 %v572
        %v575 = vmul.u32 %v568, %v559
        %v576 = vadd.s32 %v571, %v573
        %vm577 = vc.u32 %v571, %v573
        %v578 = vadd.s32 %v574, 1
        %v579 = vsel %vm577, %v578, %v574
        %v580 = vadd.s32 %v575, %v579
        %v581 = vadd.s32 %v580, 536870912
        %v582 = vshrl.u32 %v581, 30
        %v583 = vshll.u32 %v582, 30
        %v584 = vsub.s32 %v580, %v583
        %vm585 = vcmp.lt.s32.totalorder %v584, 0
        %v586 = vsub.s32 0, %v584
        %v587 = vsel %vm585, %v586, %v584
        %v588 = vclz %v587
        %v589 = vsub.s32 %v588, 2
        %vm590 = vcmp.gt.s32.totalorder 0, %v589
        %v591 = vsel %vm590, 0, %v589
        %v592 = vsub.s32 32, %v591
        %v593 = vshll.u32 %v584, %v591
        %v594 = vshrl.u32 %v576, %v592
        %v595 = vor.u32 %v593, %v594
        %v596 = vsub.s32 4294967266, %v591
        %v597 = vadd.s32 %v596, 127
        %v598 = vshll.u32 %v597, 23
        %v599 = vor.u32 4788187, %v598
        %v600 = vand.u32 2147483647, %v599
        %v602 = vcvt.s32.f32 %v595
        %v603 = vmul.f32 %v602, %v600
        %v604 = vxor.u32 %v603, 2147483648
        %v605 = vsel %vm522, %v604, %v603
        %v606 = vsub.s32 4, %v582
        %v607 = vsel %vm522, %v606, %v582
        %v608 = vsel %vm521, %v306, %v605
        %v609 = vsel %vm521, 0, %v607
        %v610 = vcosq.f32.pop %v608
        %v611 = vsinq.f32.pop %v608
        %vm612 = vweird.f32 %v306
        %v613 = vadd.s32 %v609, 3
        %v614 = vand.u32 %v613, 3
        %vm615 = vcmp.lt.s32.totalorder %v614, 2
        %vm616 = vcmp.eq.s32.totalorder %v614, 0
        %v617 = vxor.u32 %v611, 2147483648
        %v618 = vsel %vm616, %v610, %v617
        %vm619 = vcmp.eq.s32.totalorder %v614, 2
        %v620 = vxor.u32 %v610, 2147483648
        %v621 = vsel %vm619, %v620, %v611
        %v622 = vsel %vm615, %v618, %v621
        %v623 = vsel %vm612, nan, %v622
        %v624 = vand.u32 2147483647, %v307
        %vm625 = vcmp.le.f32.partialorder %v624, 0.7853982
        %vm626 = vcmp.lt.s32.totalorder %v307, 0
        %v627 = vand.u32 %v307, 2139095040
        %v628 = vshrl.u32 %v627, 23
        %v629 = vsub.s32 %v628, 127
        %v630 = vand.u32 2147483647, %v307
        %v631 = vand.u32 %v630, 8388607
        %v632 = vor.u32 %v631, 8388608
        %v633 = vsub.s32 0, %v632
        %v634 = vadd.s32 %v629, 1
        %vm635 = vcmp.gt.s32.totalorder %v634, 0
        %v636 = vsel %vm635, %v634, 0
        %v637 = vshrl.u32 %v636, 5
        %v638 = vand.u32 %v636, 31
        %v639 = vsub.s32 32, %v638
        %v640 = vshrl.u32 683565275, %v639
        %v641 = vshll.u32 683565275, %v638
        %v642 = vshrl.u32 2475754826, %v639
        %v643 = vor.u32 %v641, %v642
        %v644 = vshll.u32 2475754826, %v638
        %v645 = vshrl.u32 2131351028, %v639
        %v646 = vor.u32 %v644, %v645
        %v647 = vshll.u32 2131351028, %v638
        %v648 = vshrl.u32 2102212464, %v639
        %v649 = vor.u32 %v647, %v648
        %v650 = vshll.u32 2102212464, %v638
        %v651 = vshrl.u32 920167782, %v639
        %v652 = vor.u32 %v650, %v651
        %v653 = vshll.u32 920167782, %v638
        %v654 = vshrl.u32 1326507024, %v639
        %v655 = vor.u32 %v653, %v654
        %vm656 = vcmp.lt.s32.totalorder %v637, 1
        %vm657 = vcmp.lt.s32.totalorder %v637, 2
        %vm658 = vcmp.lt.s32.totalorder %v637, 3
        %vm659 = vcmp.lt.s32.totalorder %v637, 4
        %v660 = vsel %vm656, %v640, %v643
        %v661 = vsel %vm659, %v649, 2102212464
        %v662 = vsel %vm658, %v646, %v661
        %v663 = vsel %vm657, %v660, %v662
        %v664 = vsel %vm656, %v643, %v646
        %v665 = vsel %vm659, %v652, 920167782
        %v666 = vsel %vm658, %v649, %v665
        %v667 = vsel %vm657, %v664, %v666
        %v668 = vsel %vm656, %v646, %v649
        %v669 = vsel %vm659, %v655, 1326507024
        %v670 = vsel %vm658, %v652, %v669
        %v671 = vsel %vm657, %v668, %v670
        %v672 = vshll.u32 %v632, 8
        %v673 = vmul.u32.u64.compose %v672, %v671
        %v674 = vextract.low.u32 %v673
        %v675 = vextract.high.u32 %v673
        %v676 = vmul.u32.u64.compose %v672, %v667
        %v677 = vextract.low.u32 %v676
        %v678 = vextract.high.u32 %v676
        %v679 = vmul.u32 %v672, %v663
        %v680 = vadd.s32 %v675, %v677
        %vm681 = vc.u32 %v675, %v677
        %v682 = vadd.s32 %v678, 1
        %v683 = vsel %vm681, %v682, %v678
        %v684 = vadd.s32 %v679, %v683
        %v685 = vadd.s32 %v684, 536870912
        %v686 = vshrl.u32 %v685, 30
        %v687 = vshll.u32 %v686, 30
        %v688 = vsub.s32 %v684, %v687
        %vm689 = vcmp.lt.s32.totalorder %v688, 0
        %v690 = vsub.s32 0, %v688
        %v691 = vsel %vm689, %v690, %v688
        %v692 = vclz %v691
        %v693 = vsub.s32 %v692, 2
        %vm694 = vcmp.gt.s32.totalorder 0, %v693
        %v695 = vsel %vm694, 0, %v693
        %v696 = vsub.s32 32, %v695
        %v697 = vshll.u32 %v688, %v695
        %v698 = vshrl.u32 %v680, %v696
        %v699 = vor.u32 %v697, %v698
        %v700 = vsub.s32 4294967266, %v695
        %v701 = vadd.s32 %v700, 127
        %v702 = vshll.u32 %v701, 23
        %v703 = vor.u32 4788187, %v702
        %v704 = vand.u32 2147483647, %v703
        %v706 = vcvt.s32.f32 %v699
        %v707 = vmul.f32 %v706, %v704
        %v708 = vxor.u32 %v707, 2147483648
        %v709 = vsel %vm626, %v708, %v707
        %v710 = vsub.s32 4, %v686
        %v711 = vsel %vm626, %v710, %v686
        %v712 = vsel %vm625, %v307, %v709
        %v713 = vsel %vm625, 0, %v711
        %v714 = vcosq.f32.pop %v712
        %v715 = vsinq.f32.pop %v712
        %vm716 = vweird.f32 %v307
        %v717 = vadd.s32 %v713, 3
        %v718 = vand.u32 %v717, 3
        %vm719 = vcmp.lt.s32.totalorder %v718, 2
        %vm720 = vcmp.eq.s32.totalorder %v718, 0
        %v721 = vxor.u32 %v715, 2147483648
        %v722 = vsel %vm720, %v714, %v721
        %vm723 = vcmp.eq.s32.totalorder %v718, 2
        %v724 = vxor.u32 %v714, 2147483648
        %v725 = vsel %vm723, %v724, %v715
        %v726 = vsel %vm719, %v722, %v725
        %v727 = vsel %vm716, nan, %v726
        %v728 = vand.u32 2147483647, %v308
        %vm729 = vcmp.le.f32.partialorder %v728, 0.7853982
        %vm730 = vcmp.lt.s32.totalorder %v308, 0
        %v731 = vand.u32 %v308, 2139095040
        %v732 = vshrl.u32 %v731, 23
        %v733 = vsub.s32 %v732, 127
        %v734 = vand.u32 2147483647, %v308
        %v735 = vand.u32 %v734, 8388607
        %v736 = vor.u32 %v735, 8388608
        %v737 = vsub.s32 0, %v736
        %v738 = vadd.s32 %v733, 1
        %vm739 = vcmp.gt.s32.totalorder %v738, 0
        %v740 = vsel %vm739, %v738, 0
        %v741 = vshrl.u32 %v740, 5
        %v742 = vand.u32 %v740, 31
        %v743 = vsub.s32 32, %v742
        %v744 = vshrl.u32 683565275, %v743
        %v745 = vshll.u32 683565275, %v742
        %v746 = vshrl.u32 2475754826, %v743
        %v747 = vor.u32 %v745, %v746
        %v748 = vshll.u32 2475754826, %v742
        %v749 = vshrl.u32 2131351028, %v743
        %v750 = vor.u32 %v748, %v749
        %v751 = vshll.u32 2131351028, %v742
        %v752 = vshrl.u32 2102212464, %v743
        %v753 = vor.u32 %v751, %v752
        %v754 = vshll.u32 2102212464, %v742
        %v755 = vshrl.u32 920167782, %v743
        %v756 = vor.u32 %v754, %v755
        %v757 = vshll.u32 920167782, %v742
        %v758 = vshrl.u32 1326507024, %v743
        %v759 = vor.u32 %v757, %v758
        %vm760 = vcmp.lt.s32.totalorder %v741, 1
        %vm761 = vcmp.lt.s32.totalorder %v741, 2
        %vm762 = vcmp.lt.s32.totalorder %v741, 3
        %vm763 = vcmp.lt.s32.totalorder %v741, 4
        %v764 = vsel %vm760, %v744, %v747
        %v765 = vsel %vm763, %v753, 2102212464
        %v766 = vsel %vm762, %v750, %v765
        %v767 = vsel %vm761, %v764, %v766
        %v768 = vsel %vm760, %v747, %v750
        %v769 = vsel %vm763, %v756, 920167782
        %v770 = vsel %vm762, %v753, %v769
        %v771 = vsel %vm761, %v768, %v770
        %v772 = vsel %vm760, %v750, %v753
        %v773 = vsel %vm763, %v759, 1326507024
        %v774 = vsel %vm762, %v756, %v773
        %v775 = vsel %vm761, %v772, %v774
        %v776 = vshll.u32 %v736, 8
        %v777 = vmul.u32.u64.compose %v776, %v775
        %v778 = vextract.low.u32 %v777
        %v779 = vextract.high.u32 %v777
        %v780 = vmul.u32.u64.compose %v776, %v771
        %v781 = vextract.low.u32 %v780
        %v782 = vextract.high.u32 %v780
        %v783 = vmul.u32 %v776, %v767
        %v784 = vadd.s32 %v779, %v781
        %vm785 = vc.u32 %v779, %v781
        %v786 = vadd.s32 %v782, 1
        %v787 = vsel %vm785, %v786, %v782
        %v788 = vadd.s32 %v783, %v787
        %v789 = vadd.s32 %v788, 536870912
        %v790 = vshrl.u32 %v789, 30
        %v791 = vshll.u32 %v790, 30
        %v792 = vsub.s32 %v788, %v791
        %vm793 = vcmp.lt.s32.totalorder %v792, 0
        %v794 = vsub.s32 0, %v792
        %v795 = vsel %vm793, %v794, %v792
        %v796 = vclz %v795
        %v797 = vsub.s32 %v796, 2
        %vm798 = vcmp.gt.s32.totalorder 0, %v797
        %v799 = vsel %vm798, 0, %v797
        %v800 = vsub.s32 32, %v799
        %v801 = vshll.u32 %v792, %v799
        %v802 = vshrl.u32 %v784, %v800
        %v803 = vor.u32 %v801, %v802
        %v804 = vsub.s32 4294967266, %v799
        %v805 = vadd.s32 %v804, 127
        %v806 = vshll.u32 %v805, 23
        %v807 = vor.u32 4788187, %v806
        %v808 = vand.u32 2147483647, %v807
        %v810 = vcvt.s32.f32 %v803
        %v811 = vmul.f32 %v810, %v808
        %v812 = vxor.u32 %v811, 2147483648
        %v813 = vsel %vm730, %v812, %v811
        %v814 = vsub.s32 4, %v790
        %v815 = vsel %vm730, %v814, %v790
        %v816 = vsel %vm729, %v308, %v813
        %v817 = vsel %vm729, 0, %v815
        %v818 = vcosq.f32.pop %v816
        %v819 = vsinq.f32.pop %v816
        %vm820 = vweird.f32 %v308
        %v821 = vadd.s32 %v817, 3
        %v822 = vand.u32 %v821, 3
        %vm823 = vcmp.lt.s32.totalorder %v822, 2
        %vm824 = vcmp.eq.s32.totalorder %v822, 0
        %v825 = vxor.u32 %v819, 2147483648
        %v826 = vsel %vm824, %v818, %v825
        %vm827 = vcmp.eq.s32.totalorder %v822, 2
        %v828 = vxor.u32 %v818, 2147483648
        %v829 = vsel %vm827, %v828, %v819
        %v830 = vsel %vm823, %v826, %v829
        %v831 = vsel %vm820, nan, %v830
        %v832 = vand.u32 2147483647, %v309
        %vm833 = vcmp.le.f32.partialorder %v832, 0.7853982
        %vm834 = vcmp.lt.s32.totalorder %v309, 0
        %v835 = vand.u32 %v309, 2139095040
        %v836 = vshrl.u32 %v835, 23
        %v837 = vsub.s32 %v836, 127
        %v838 = vand.u32 2147483647, %v309
        %v839 = vand.u32 %v838, 8388607
        %v840 = vor.u32 %v839, 8388608
        %v841 = vsub.s32 0, %v840
        %v842 = vadd.s32 %v837, 1
        %vm843 = vcmp.gt.s32.totalorder %v842, 0
        %v844 = vsel %vm843, %v842, 0
        %v845 = vshrl.u32 %v844, 5
        %v846 = vand.u32 %v844, 31
        %v847 = vsub.s32 32, %v846
        %v848 = vshrl.u32 683565275, %v847
        %v849 = vshll.u32 683565275, %v846
        %v850 = vshrl.u32 2475754826, %v847
        %v851 = vor.u32 %v849, %v850
        %v852 = vshll.u32 2475754826, %v846
        %v853 = vshrl.u32 2131351028, %v847
        %v854 = vor.u32 %v852, %v853
        %v855 = vshll.u32 2131351028, %v846
        %v856 = vshrl.u32 2102212464, %v847
        %v857 = vor.u32 %v855, %v856
        %v858 = vshll.u32 2102212464, %v846
        %v859 = vshrl.u32 920167782, %v847
        %v860 = vor.u32 %v858, %v859
        %v861 = vshll.u32 920167782, %v846
        %v862 = vshrl.u32 1326507024, %v847
        %v863 = vor.u32 %v861, %v862
        %vm864 = vcmp.lt.s32.totalorder %v845, 1
        %vm865 = vcmp.lt.s32.totalorder %v845, 2
        %vm866 = vcmp.lt.s32.totalorder %v845, 3
        %vm867 = vcmp.lt.s32.totalorder %v845, 4
        %v868 = vsel %vm864, %v848, %v851
        %v869 = vsel %vm867, %v857, 2102212464
        %v870 = vsel %vm866, %v854, %v869
        %v871 = vsel %vm865, %v868, %v870
        %v872 = vsel %vm864, %v851, %v854
        %v873 = vsel %vm867, %v860, 920167782
        %v874 = vsel %vm866, %v857, %v873
        %v875 = vsel %vm865, %v872, %v874
        %v876 = vsel %vm864, %v854, %v857
        %v877 = vsel %vm867, %v863, 1326507024
        %v878 = vsel %vm866, %v860, %v877
        %v879 = vsel %vm865, %v876, %v878
        %v880 = vshll.u32 %v840, 8
        %v881 = vmul.u32.u64.compose %v880, %v879
        %v882 = vextract.low.u32 %v881
        %v883 = vextract.high.u32 %v881
        %v884 = vmul.u32.u64.compose %v880, %v875
        %v885 = vextract.low.u32 %v884
        %v886 = vextract.high.u32 %v884
        %v887 = vmul.u32 %v880, %v871
        %v888 = vadd.s32 %v883, %v885
        %vm889 = vc.u32 %v883, %v885
        %v890 = vadd.s32 %v886, 1
        %v891 = vsel %vm889, %v890, %v886
        %v892 = vadd.s32 %v887, %v891
        %v893 = vadd.s32 %v892, 536870912
        %v894 = vshrl.u32 %v893, 30
        %v895 = vshll.u32 %v894, 30
        %v896 = vsub.s32 %v892, %v895
        %vm897 = vcmp.lt.s32.totalorder %v896, 0
        %v898 = vsub.s32 0, %v896
        %v899 = vsel %vm897, %v898, %v896
        %v900 = vclz %v899
        %v901 = vsub.s32 %v900, 2
        %vm902 = vcmp.gt.s32.totalorder 0, %v901
        %v903 = vsel %vm902, 0, %v901
        %v904 = vsub.s32 32, %v903
        %v905 = vshll.u32 %v896, %v903
        %v906 = vshrl.u32 %v888, %v904
        %v907 = vor.u32 %v905, %v906
        %v908 = vsub.s32 4294967266, %v903
        %v909 = vadd.s32 %v908, 127
        %v910 = vshll.u32 %v909, 23
        %v911 = vor.u32 4788187, %v910
        %v912 = vand.u32 2147483647, %v911
        %v914 = vcvt.s32.f32 %v907
        %v915 = vmul.f32 %v914, %v912
        %v916 = vxor.u32 %v915, 2147483648
        %v917 = vsel %vm834, %v916, %v915
        %v918 = vsub.s32 4, %v894
        %v919 = vsel %vm834, %v918, %v894
        %v920 = vsel %vm833, %v309, %v917
        %v921 = vsel %vm833, 0, %v919
        %v922 = vcosq.f32.pop %v920
        %v923 = vsinq.f32.pop %v920
        %vm924 = vweird.f32 %v309
        %v925 = vadd.s32 %v921, 3
        %v926 = vand.u32 %v925, 3
        %vm927 = vcmp.lt.s32.totalorder %v926, 2
        %vm928 = vcmp.eq.s32.totalorder %v926, 0
        %v929 = vxor.u32 %v923, 2147483648
        %v930 = vsel %vm928, %v922, %v929
        %vm931 = vcmp.eq.s32.totalorder %v926, 2
        %v932 = vxor.u32 %v922, 2147483648
        %v933 = vsel %vm931, %v932, %v923
        %v934 = vsel %vm927, %v930, %v933
        %v935 = vsel %vm924, nan, %v934
        %v936 = vand.u32 2147483647, %v310
        %vm937 = vcmp.le.f32.partialorder %v936, 0.7853982
        %vm938 = vcmp.lt.s32.totalorder %v310, 0
        %v939 = vand.u32 %v310, 2139095040
        %v940 = vshrl.u32 %v939, 23
        %v941 = vsub.s32 %v940, 127
        %v942 = vand.u32 2147483647, %v310
        %v943 = vand.u32 %v942, 8388607
        %v944 = vor.u32 %v943, 8388608
        %v945 = vsub.s32 0, %v944
        %v946 = vadd.s32 %v941, 1
        %vm947 = vcmp.gt.s32.totalorder %v946, 0
        %v948 = vsel %vm947, %v946, 0
        %v949 = vshrl.u32 %v948, 5
        %v950 = vand.u32 %v948, 31
        %v951 = vsub.s32 32, %v950
        %v952 = vshrl.u32 683565275, %v951
        %v953 = vshll.u32 683565275, %v950
        %v954 = vshrl.u32 2475754826, %v951
        %v955 = vor.u32 %v953, %v954
        %v956 = vshll.u32 2475754826, %v950
        %v957 = vshrl.u32 2131351028, %v951
        %v958 = vor.u32 %v956, %v957
        %v959 = vshll.u32 2131351028, %v950
        %v960 = vshrl.u32 2102212464, %v951
        %v961 = vor.u32 %v959, %v960
        %v962 = vshll.u32 2102212464, %v950
        %v963 = vshrl.u32 920167782, %v951
        %v964 = vor.u32 %v962, %v963
        %v965 = vshll.u32 920167782, %v950
        %v966 = vshrl.u32 1326507024, %v951
        %v967 = vor.u32 %v965, %v966
        %vm968 = vcmp.lt.s32.totalorder %v949, 1
        %vm969 = vcmp.lt.s32.totalorder %v949, 2
        %vm970 = vcmp.lt.s32.totalorder %v949, 3
        %vm971 = vcmp.lt.s32.totalorder %v949, 4
        %v972 = vsel %vm968, %v952, %v955
        %v973 = vsel %vm971, %v961, 2102212464
        %v974 = vsel %vm970, %v958, %v973
        %v975 = vsel %vm969, %v972, %v974
        %v976 = vsel %vm968, %v955, %v958
        %v977 = vsel %vm971, %v964, 920167782
        %v978 = vsel %vm970, %v961, %v977
        %v979 = vsel %vm969, %v976, %v978
        %v980 = vsel %vm968, %v958, %v961
        %v981 = vsel %vm971, %v967, 1326507024
        %v982 = vsel %vm970, %v964, %v981
        %v983 = vsel %vm969, %v980, %v982
        %v984 = vshll.u32 %v944, 8
        %v985 = vmul.u32.u64.compose %v984, %v983
        %v986 = vextract.low.u32 %v985
        %v987 = vextract.high.u32 %v985
        %v988 = vmul.u32.u64.compose %v984, %v979
        %v989 = vextract.low.u32 %v988
        %v990 = vextract.high.u32 %v988
        %v991 = vmul.u32 %v984, %v975
        %v992 = vadd.s32 %v987, %v989
        %vm993 = vc.u32 %v987, %v989
        %v994 = vadd.s32 %v990, 1
        %v995 = vsel %vm993, %v994, %v990
        %v996 = vadd.s32 %v991, %v995
        %v997 = vadd.s32 %v996, 536870912
        %v998 = vshrl.u32 %v997, 30
        %v999 = vshll.u32 %v998, 30
        %v1000 = vsub.s32 %v996, %v999
        %vm1001 = vcmp.lt.s32.totalorder %v1000, 0
        %v1002 = vsub.s32 0, %v1000
        %v1003 = vsel %vm1001, %v1002, %v1000
        %v1004 = vclz %v1003
        %v1005 = vsub.s32 %v1004, 2
        %vm1006 = vcmp.gt.s32.totalorder 0, %v1005
        %v1007 = vsel %vm1006, 0, %v1005
        %v1008 = vsub.s32 32, %v1007
        %v1009 = vshll.u32 %v1000, %v1007
        %v1010 = vshrl.u32 %v992, %v1008
        %v1011 = vor.u32 %v1009, %v1010
        %v1012 = vsub.s32 4294967266, %v1007
        %v1013 = vadd.s32 %v1012, 127
        %v1014 = vshll.u32 %v1013, 23
        %v1015 = vor.u32 4788187, %v1014
        %v1016 = vand.u32 2147483647, %v1015
        %v1018 = vcvt.s32.f32 %v1011
        %v1019 = vmul.f32 %v1018, %v1016
        %v1020 = vxor.u32 %v1019, 2147483648
        %v1021 = vsel %vm938, %v1020, %v1019
        %v1022 = vsub.s32 4, %v998
        %v1023 = vsel %vm938, %v1022, %v998
        %v1024 = vsel %vm937, %v310, %v1021
        %v1025 = vsel %vm937, 0, %v1023
        %v1026 = vcosq.f32.pop %v1024
        %v1027 = vsinq.f32.pop %v1024
        %vm1028 = vweird.f32 %v310
        %v1029 = vadd.s32 %v1025, 3
        %v1030 = vand.u32 %v1029, 3
        %vm1031 = vcmp.lt.s32.totalorder %v1030, 2
        %vm1032 = vcmp.eq.s32.totalorder %v1030, 0
        %v1033 = vxor.u32 %v1027, 2147483648
        %v1034 = vsel %vm1032, %v1026, %v1033
        %vm1035 = vcmp.eq.s32.totalorder %v1030, 2
        %v1036 = vxor.u32 %v1026, 2147483648
        %v1037 = vsel %vm1035, %v1036, %v1027
        %v1038 = vsel %vm1031, %v1034, %v1037
        %v1039 = vsel %vm1028, nan, %v1038
        %v1040 = vand.u32 2147483647, %v311
        %vm1041 = vcmp.le.f32.partialorder %v1040, 0.7853982
        %vm1042 = vcmp.lt.s32.totalorder %v311, 0
        %v1043 = vand.u32 %v311, 2139095040
        %v1044 = vshrl.u32 %v1043, 23
        %v1045 = vsub.s32 %v1044, 127
        %v1046 = vand.u32 2147483647, %v311
        %v1047 = vand.u32 %v1046, 8388607
        %v1048 = vor.u32 %v1047, 8388608
        %v1049 = vsub.s32 0, %v1048
        %v1050 = vadd.s32 %v1045, 1
        %vm1051 = vcmp.gt.s32.totalorder %v1050, 0
        %v1052 = vsel %vm1051, %v1050, 0
        %v1053 = vshrl.u32 %v1052, 5
        %v1054 = vand.u32 %v1052, 31
        %v1055 = vsub.s32 32, %v1054
        %v1056 = vshrl.u32 683565275, %v1055
        %v1057 = vshll.u32 683565275, %v1054
        %v1058 = vshrl.u32 2475754826, %v1055
        %v1059 = vor.u32 %v1057, %v1058
        %v1060 = vshll.u32 2475754826, %v1054
        %v1061 = vshrl.u32 2131351028, %v1055
        %v1062 = vor.u32 %v1060, %v1061
        %v1063 = vshll.u32 2131351028, %v1054
        %v1064 = vshrl.u32 2102212464, %v1055
        %v1065 = vor.u32 %v1063, %v1064
        %v1066 = vshll.u32 2102212464, %v1054
        %v1067 = vshrl.u32 920167782, %v1055
        %v1068 = vor.u32 %v1066, %v1067
        %v1069 = vshll.u32 920167782, %v1054
        %v1070 = vshrl.u32 1326507024, %v1055
        %v1071 = vor.u32 %v1069, %v1070
        %vm1072 = vcmp.lt.s32.totalorder %v1053, 1
        %vm1073 = vcmp.lt.s32.totalorder %v1053, 2
        %vm1074 = vcmp.lt.s32.totalorder %v1053, 3
        %vm1075 = vcmp.lt.s32.totalorder %v1053, 4
        %v1076 = vsel %vm1072, %v1056, %v1059
        %v1077 = vsel %vm1075, %v1065, 2102212464
        %v1078 = vsel %vm1074, %v1062, %v1077
        %v1079 = vsel %vm1073, %v1076, %v1078
        %v1080 = vsel %vm1072, %v1059, %v1062
        %v1081 = vsel %vm1075, %v1068, 920167782
        %v1082 = vsel %vm1074, %v1065, %v1081
        %v1083 = vsel %vm1073, %v1080, %v1082
        %v1084 = vsel %vm1072, %v1062, %v1065
        %v1085 = vsel %vm1075, %v1071, 1326507024
        %v1086 = vsel %vm1074, %v1068, %v1085
        %v1087 = vsel %vm1073, %v1084, %v1086
        %v1088 = vshll.u32 %v1048, 8
        %v1089 = vmul.u32.u64.compose %v1088, %v1087
        %v1090 = vextract.low.u32 %v1089
        %v1091 = vextract.high.u32 %v1089
        %v1092 = vmul.u32.u64.compose %v1088, %v1083
        %v1093 = vextract.low.u32 %v1092
        %v1094 = vextract.high.u32 %v1092
        %v1095 = vmul.u32 %v1088, %v1079
        %v1096 = vadd.s32 %v1091, %v1093
        %vm1097 = vc.u32 %v1091, %v1093
        %v1098 = vadd.s32 %v1094, 1
        %v1099 = vsel %vm1097, %v1098, %v1094
        %v1100 = vadd.s32 %v1095, %v1099
        %v1101 = vadd.s32 %v1100, 536870912
        %v1102 = vshrl.u32 %v1101, 30
        %v1103 = vshll.u32 %v1102, 30
        %v1104 = vsub.s32 %v1100, %v1103
        %vm1105 = vcmp.lt.s32.totalorder %v1104, 0
        %v1106 = vsub.s32 0, %v1104
        %v1107 = vsel %vm1105, %v1106, %v1104
        %v1108 = vclz %v1107
        %v1109 = vsub.s32 %v1108, 2
        %vm1110 = vcmp.gt.s32.totalorder 0, %v1109
        %v1111 = vsel %vm1110, 0, %v1109
        %v1112 = vsub.s32 32, %v1111
        %v1113 = vshll.u32 %v1104, %v1111
        %v1114 = vshrl.u32 %v1096, %v1112
        %v1115 = vor.u32 %v1113, %v1114
        %v1116 = vsub.s32 4294967266, %v1111
        %v1117 = vadd.s32 %v1116, 127
        %v1118 = vshll.u32 %v1117, 23
        %v1119 = vor.u32 4788187, %v1118
        %v1120 = vand.u32 2147483647, %v1119
        %v1122 = vcvt.s32.f32 %v1115
        %v1123 = vmul.f32 %v1122, %v1120
        %v1124 = vxor.u32 %v1123, 2147483648
        %v1125 = vsel %vm1042, %v1124, %v1123
        %v1126 = vsub.s32 4, %v1102
        %v1127 = vsel %vm1042, %v1126, %v1102
        %v1128 = vsel %vm1041, %v311, %v1125
        %v1129 = vsel %vm1041, 0, %v1127
        %v1130 = vcosq.f32.pop %v1128
        %v1131 = vsinq.f32.pop %v1128
        %vm1132 = vweird.f32 %v311
        %v1133 = vadd.s32 %v1129, 3
        %v1134 = vand.u32 %v1133, 3
        %vm1135 = vcmp.lt.s32.totalorder %v1134, 2
        %vm1136 = vcmp.eq.s32.totalorder %v1134, 0
        %v1137 = vxor.u32 %v1131, 2147483648
        %v1138 = vsel %vm1136, %v1130, %v1137
        %vm1139 = vcmp.eq.s32.totalorder %v1134, 2
        %v1140 = vxor.u32 %v1130, 2147483648
        %v1141 = vsel %vm1139, %v1140, %v1131
        %v1142 = vsel %vm1135, %v1138, %v1141
        %v1143 = vsel %vm1132, nan, %v1142
        %1144 = vst [vmem:[%s213] sm:$0xff] %v415
        %1145 = vst [vmem:[%s213 + $0x8] sm:$0xff] %v519
        %1146 = vst [vmem:[%s213 + $0x10] sm:$0xff] %v623
        %1147 = vst [vmem:[%s213 + $0x18] sm:$0xff] %v727
        %1148 = vst [vmem:[%s213 + $0x20] sm:$0xff] %v831
        %1149 = vst [vmem:[%s213 + $0x28] sm:$0xff] %v935
        %1150 = vst [vmem:[%s213 + $0x30] sm:$0xff] %v1039
        %1151 = vst [vmem:[%s213 + $0x38] sm:$0xff] %v1143
        %s1152 = sand.u32 %s93, 1
        %s1153 = scalar_lea.sflag [#allocation4], %s1152
        %s1154 = sand.u32 %s93, 1
        %s1155 = smul.addr %s1154, 64
        %s1156 = scalar_lea.vmem [#allocation3], %s1155
        // Predicated region
        $region74: #{tpu_custom_call.1} parent=68 // pred_check
          %p1157 = pneg %p103
        $region75: #{tpu_custom_call.1} parent=68 // pred_check_branch
          %1159 = sbr.rel (%p1157) target = $region77
        $region76: #{tpu_custom_call.1} parent=68 // pred_region
          %s1160 = smul.u32 4, %s17
          %s1162 = ssub.s32 1024, 1024
          %1163 = vsyncadd %s1153, %s1162
          %s1164 = smul.addr %s1160, 128
          %s1165 = scalar_lea.hbm %s3, %s1164
          %s1166 = sshll.u32 %s1156, 4
          %s1167 = int_to_ptr.vmem [resolvable:$true] %s1166
          %1172 = dma.vmem_to_hbm [thread:$0]  %s1167, 1024, %s1165, %s1153, 512, 1024, 32
        $region77: #{tpu_custom_call.1} parent=68 // pred_fallthru
          _
      $region69: #{tpu_custom_call.1} parent=5 // pred_fallthru
        _
      %p1173 = scmp.le.s32.totalorder 2, %s12
      // Predicated region
      $region78: #{tpu_custom_call.1} parent=5 // pred_check
        %p1174 = pneg %p1173
      $region79: #{tpu_custom_call.1} parent=5 // pred_check_branch
        %1176 = sbr.rel (%p1174) target = $region81
      $region80: #{tpu_custom_call.1} parent=5 // pred_region
        %s1177 = ssub.s32 %s12, 2
        // Predicated region
        $region82: #{tpu_custom_call.1} parent=80 // pred_check
          %p1178 = pneg %p109
        $region83: #{tpu_custom_call.1} parent=80 // pred_check_branch
          %1180 = sbr.rel (%p1178) target = $region85
        $region84: #{tpu_custom_call.1} parent=80 // pred_region
          %s1181 = sand.u32 %s94, 1
          %s1182 = scalar_lea.sflag [#allocation4], %s1181
          %s1183 = sand.u32 %s94, 1
          %s1184 = smul.addr %s1183, 64
          %s1185 = scalar_lea.vmem [#allocation3], %s1184
          %1186 = dma.done %s1182, 1024
        $region85: #{tpu_custom_call.1} parent=80 // pred_fallthru
          _
      $region81: #{tpu_custom_call.1} parent=5 // pred_fallthru
        _
    $region6: #{tpu_custom_call.1} parent=1 // loop_footer
      %s16 = sadd.s32 1, %s12
    $region7: #{tpu_custom_call.1} parent=1 // loop_footer_branch
      %11 = sbr.rel target = $region3
    $region8: #{tpu_custom_call.1} parent=1 // loop_exit
      _
    %1187 = vsyncpa [#allocation4], 1
    %s1188 = scalar_lea.sflag [#allocation4], 1
    %1189 = vsyncpa %s1188, 1

</llo_original>
